<compile_context>
chip_gen: v5e
topology: v5e:2x2
jax: 0.10.0
libtpu: 0.0.40
codegen_flags: <defaults>
</compile_context>

<pallas_src>
import math

import jax
import jax.numpy as jnp
from jax.experimental import pallas as pl
from jax.experimental.pallas import tpu as pltpu


# ---------------------------------------------------------------------------
# Pallas kernel: single HBM -> HBM DMA copy (no grid, no VMEM staging).
# ---------------------------------------------------------------------------
def _flatten_dma_kernel(x_hbm, o_hbm, sem):
    cp = pltpu.make_async_copy(x_hbm, o_hbm, sem)
    cp.start()
    cp.wait()


def flatten_materialize(x):
    """Flatten with an explicitly materialized output buffer.

    (N, d1, ..., dk) -> (N, d1*...*dk), copied via one HBM->HBM DMA.
    Use only when a fresh buffer is actually needed; otherwise use flatten().
    """
    N = x.shape[0]
    F = int(math.prod(x.shape[1:]))
    x2 = x.reshape(N, F)  # metadata-only layout plumbing (contiguous row-major)

    return pl.pallas_call(
        _flatten_dma_kernel,
        out_shape=jax.ShapeDtypeStruct((N, F), x.dtype),
        in_specs=[pl.BlockSpec(memory_space=pl.ANY)],
        out_specs=pl.BlockSpec(memory_space=pl.ANY),
        scratch_shapes=[pltpu.SemaphoreType.DMA],
    )(x2)


# ---------------------------------------------------------------------------
# Default entry point: metadata-only reshape (the highest-value "optimization"
# from the review -- do not run a kernel at all).
# ---------------------------------------------------------------------------
def flatten(x):
    """Pallas-module equivalent of Flatten: (N, ...) -> (N, prod(rest)).

    Pure view / reshape; XLA lowers this to a no-cost metadata change for
    contiguous inputs.  No kernel launch, no HBM round-trip.
    """
    return x.reshape(x.shape[0], -1)


def flatten_ref(x):
    """Pure-JAX reference matching the PyTorch module."""
    return x.reshape(x.shape[0], -1)


if __name__ == "__main__":
    key = jax.random.PRNGKey(0)

    # Primary shape per the module spec (batch=2, channels=4, spatial=16),
    # plus ragged and larger shapes exercising the DMA path generically.
    shapes = [(2, 4, 16, 16), (2, 3, 7, 9), (8, 16, 32, 32)]

    for i, shp in enumerate(shapes):
        k = jax.random.fold_in(key, i)
        x = jax.random.normal(k, shp, dtype=jnp.float32)
        ref = flatten_ref(x)

        # Fast path (recommended default): metadata-only reshape.
        fast = jax.block_until_ready(flatten(x))
        assert fast.shape == ref.shape, f"fast-path shape mismatch for {shp}"
        assert jnp.array_equal(fast, ref), f"fast-path value mismatch for {shp}"

        # Pallas kernel path (materialized copy via single HBM->HBM DMA).
        out = jax.block_until_ready(flatten_materialize(x))
        assert out.shape == ref.shape, f"kernel shape mismatch for {shp}"
        assert jnp.array_equal(out, ref), f"kernel value mismatch for {shp}"

    print("KERNEL_OK")
</pallas_src>

<mosaic_0001>
module attributes {stable_mosaic.version = 11 : i64} {
  func.func @_flatten_dma_kernel(%arg0: memref<2x1024xf32, #tpu.memory_space<any>>, %arg1: memref<2x1024xf32, #tpu.memory_space<any>>, %arg2: memref<!tpu.dma_semaphore, #tpu.memory_space<semaphore_mem>>) attributes {dimension_semantics = [], scalar_prefetch = 0 : i64, scratch_operands = 1 : i64, tpu.core_type = #tpu.core_type<tc>} {
    tpu.enqueue_dma source(%arg0 : memref<2x1024xf32, #tpu.memory_space<any>>) target(%arg1 : memref<2x1024xf32, #tpu.memory_space<any>>) target_semaphore(%arg2 : memref<!tpu.dma_semaphore, #tpu.memory_space<semaphore_mem>>)
    tpu.wait_dma2 semaphore(%arg2 : memref<!tpu.dma_semaphore, #tpu.memory_space<semaphore_mem>>) src(%arg0 : memref<2x1024xf32, #tpu.memory_space<any>>) dst(%arg1 : memref<2x1024xf32, #tpu.memory_space<any>>)
    return
  }
}

</mosaic_0001>

<llo_original>
// kernel: tpu_custom_call.1
$region0: #{tpu_custom_call.1}
  #allocation0 [shape = 'u32[]', space=smem, size = 0x4, offset = 0x4, fixed_abs, tag = 'smem constant byte address 0x4 - core index']
  #allocation1 [shape = 'u32[72,128]{1,0:T(1,128)}', space=vmem, size = 0x9000, scoped, tag = 'internal scratch']
  #allocation2 [shape = 's32[1]{0}', space=sflag, size = 0x4, scoped, tag = 'scratch operand']
  #allocation3 [shape = 's32[]', space=sflag, size = 0x4, offset = 0, fixed_abs, tag = 'sflag constant byte address 0x0 - dummy sync flag']
  #allocation4 [shape = 'u32[0]{0}', space=smem, size = 0, offset = 0, fixed_abs, tag = 'smem constant byte address 0x0 - null']
  %s0 = inlined_call_operand.hbm [shape: f32[2,1024], index: 0, kind: input, shape index: {}]
  %s1 = inlined_call_operand.hbm [shape: f32[2,1024], index: 1, kind: output, shape index: {}]
  %s2 = sld [smem:[#allocation0]]
  $region2: #{tpu_custom_call.1} parent=0
    _
  %s4 = ssub.s32 1, %s2
  %s5 = scalar_select 0, %s4, %s2
  %s7 = sshll.u32 1, 14
  %s8 = sxor.u32 4294967295, %s7
  %s10 = sshll.u32 %s0, 4
  %s11 = int_to_ptr.hbm [resolvable:$true] %s10
  %s12 = sshll.u32 %s1, 4
  %s13 = int_to_ptr.hbm [resolvable:$true] %s12
  %16 = dma.general %s11, 256, %s13, [#allocation2], [#allocation3], [#allocation4], 0, 0
  %s17 = smul.u32 2, 1
  %s18 = smul.u32 %s17, 8
  %s19 = sshll.u32 %s18, 4
  %20 = dma.done [#allocation2], %s19
  %21 = vsyncmov [#allocation2]
  %s22 = vpop.sfrf %21
  %p23 = scmp.eq.s32.totalorder %s22, 0
  %p24 = pneg %p23
  %26 = shalt.err (%p24)

</llo_original>
